<compile_context>
chip_gen: v5e
topology: v5e:2x2
jax: 0.10.0
libtpu: 0.0.40
codegen_flags: <defaults>
</compile_context>

<pallas_src>
import jax
import jax.numpy as jnp
from jax.experimental import pallas as pl
from jax.experimental.pallas import tpu as pltpu

input_size = 28 * 28   # 784
hidden_size = 100
num_classes = 10

TB_MAX = 1024          # max batch-tile rows (sweet spot per roofline sweep)


def _round_up(n, m):
    return ((n + m - 1) // m) * m


def _choose_tb(B):
    """Batch tile: multiple of 8 (sublane), capped at TB_MAX, and kept small
    enough that mid-size batches still get >= 2 grid steps (v7x megacore)."""
    tb = min(TB_MAX, _round_up(B, 8))
    if B > 256:
        tb = min(tb, _round_up(pl.cdiv(B, 2), 256))
    return max(tb, 8)


def mlp_kernel(x_ref, w1_ref, b1_ref, w2_ref, b2_ref, out_ref):
    # l1: x @ W1 + b1 -> ReLU.  x arrives f32; cast to bf16 on the VPU (free
    # filler, kernel is DMA-bound), f32 accumulation on the MXU.
    x = x_ref[...].astype(jnp.bfloat16)
    h = jnp.dot(x, w1_ref[...], preferred_element_type=jnp.float32)
    h = jnp.maximum(h + b1_ref[...], 0.0)
    # l2: h @ W2 + b2
    o = jnp.dot(h.astype(jnp.bfloat16), w2_ref[...],
                preferred_element_type=jnp.float32)
    out_ref[...] = (o + b2_ref[...]).astype(out_ref.dtype)


def neural_net_forward(x, w1_bf16, b1, w2_bf16, b2):
    """x: [B, 784] f32; w1_bf16: [784, 100] bf16; b1: [1, 100] f32;
       w2_bf16: [100, 10] bf16; b2: [1, 10] f32.  Returns [B, 10] f32."""
    B, K = x.shape
    H = w1_bf16.shape[1]
    N = w2_bf16.shape[1]

    tb = _choose_tb(B)
    grid = (pl.cdiv(B, tb),)

    return pl.pallas_call(
        mlp_kernel,
        out_shape=jax.ShapeDtypeStruct((B, N), jnp.float32),
        grid_spec=pltpu.PrefetchScalarGridSpec(
            num_scalar_prefetch=0,
            grid=grid,
            in_specs=[
                # x tile marches over the batch; ragged 784 is the full dim.
                pl.BlockSpec((tb, K), lambda i: (i, 0)),
                # Grid-invariant weights/biases stay VMEM-resident (block
                # index constant -> no re-DMA per step).
                pl.BlockSpec((K, H), lambda i: (0, 0)),
                pl.BlockSpec((1, H), lambda i: (0, 0)),
                pl.BlockSpec((H, N), lambda i: (0, 0)),
                pl.BlockSpec((1, N), lambda i: (0, 0)),
            ],
            # Write the true (tb, 10) output directly; no padded store + slice.
            out_specs=pl.BlockSpec((tb, N), lambda i: (i, 0)),
        ),
        compiler_params=pltpu.CompilerParams(
            dimension_semantics=("parallel",)),
    )(x, w1_bf16, b1, w2_bf16, b2)


def prepare_params(w1, b1, w2, b2):
    """One-time hoist (call outside the jitted forward): cast MXU weight
    operands to bf16, keep biases in f32 (added after f32 accumulation)."""
    return (w1.astype(jnp.bfloat16),
            b1.reshape(1, -1).astype(jnp.float32),
            w2.astype(jnp.bfloat16),
            b2.reshape(1, -1).astype(jnp.float32))


def init_params(key):
    # Mimic PyTorch nn.Linear default init: U(-1/sqrt(fan_in), 1/sqrt(fan_in)).
    # Weights stored as [in, out] (transposed vs torch) so the kernel does x @ W + b.
    k1, k2, k3, k4 = jax.random.split(key, 4)
    bound1 = 1.0 / jnp.sqrt(jnp.float32(input_size))
    bound2 = 1.0 / jnp.sqrt(jnp.float32(hidden_size))
    w1 = jax.random.uniform(k1, (input_size, hidden_size), jnp.float32, -bound1, bound1)
    b1 = jax.random.uniform(k2, (hidden_size,), jnp.float32, -bound1, bound1)
    w2 = jax.random.uniform(k3, (hidden_size, num_classes), jnp.float32, -bound2, bound2)
    b2 = jax.random.uniform(k4, (num_classes,), jnp.float32, -bound2, bound2)
    return w1, b1, w2, b2


if __name__ == "__main__":
    key = jax.random.PRNGKey(0)
    kx, kp = jax.random.split(key)
    w1, b1, w2, b2 = init_params(kp)
    params = prepare_params(w1, b1, w2, b2)          # one-time, outside jit

    fwd = jax.jit(neural_net_forward)

    def ref_fwd(xx):
        return jnp.maximum(xx @ w1 + b1, 0.0) @ w2 + b2

    # Small demo batch (module-scale usage).
    batch = 8
    x = jax.random.normal(kx, (batch, input_size), jnp.float32)
    out = jax.block_until_ready(fwd(x, *params))
    ref = ref_fwd(x)
    assert out.shape == (batch, num_classes)
    assert jnp.allclose(out, ref, atol=2e-2, rtol=2e-2), \
        float(jnp.max(jnp.abs(out - ref)))

    # Larger batch: 2 pipelined (and v7x megacore-shardable) grid steps.
    batch2 = 512
    x2 = jax.random.normal(jax.random.PRNGKey(1), (batch2, input_size), jnp.float32)
    out2 = jax.block_until_ready(fwd(x2, *params))
    ref2 = ref_fwd(x2)
    assert out2.shape == (batch2, num_classes)
    assert jnp.allclose(out2, ref2, atol=2e-2, rtol=2e-2), \
        float(jnp.max(jnp.abs(out2 - ref2)))

    print("KERNEL_OK")
</pallas_src>

<mosaic_0001>
module attributes {stable_mosaic.version = 11 : i64} {
  func.func @mlp_kernel(%arg0: i32, %arg1: memref<8x784xf32, #tpu.memory_space<vmem>>, %arg2: memref<784x100xbf16, #tpu.memory_space<vmem>>, %arg3: memref<1x100xf32, #tpu.memory_space<vmem>>, %arg4: memref<100x10xbf16, #tpu.memory_space<vmem>>, %arg5: memref<1x10xf32, #tpu.memory_space<vmem>>, %arg6: memref<8x10xf32, #tpu.memory_space<vmem>>) attributes {dimension_semantics = [#tpu.dimension_semantics<parallel>], iteration_bounds = array<i64: 1>, scalar_prefetch = 0 : i64, scratch_operands = 0 : i64, tpu.core_type = #tpu.core_type<tc>, window_params = [{transform_indices = @transform_0, window_bounds = array<i64: 8, 784>}, {pipeline_mode = #tpu.pipeline_mode<synchronous>, transform_indices = @transform_1, window_bounds = array<i64: 784, 100>}, {pipeline_mode = #tpu.pipeline_mode<synchronous>, transform_indices = @transform_2, window_bounds = array<i64: 1, 100>}, {pipeline_mode = #tpu.pipeline_mode<synchronous>, transform_indices = @transform_3, window_bounds = array<i64: 100, 10>}, {pipeline_mode = #tpu.pipeline_mode<synchronous>, transform_indices = @transform_4, window_bounds = array<i64: 1, 10>}, {transform_indices = @transform_5, window_bounds = array<i64: 8, 10>}]} {
    %c0 = arith.constant 0 : index
    %c0_0 = arith.constant 0 : index
    %0 = vector.load %arg1[%c0, %c0_0] : memref<8x784xf32, #tpu.memory_space<vmem>>, vector<8x784xf32>
    %1 = arith.truncf %0 : vector<8x784xf32> to vector<8x784xbf16>
    %c0_1 = arith.constant 0 : index
    %c0_2 = arith.constant 0 : index
    %2 = vector.load %arg2[%c0_1, %c0_2] : memref<784x100xbf16, #tpu.memory_space<vmem>>, vector<784x100xbf16>
    %cst = arith.constant dense<0.000000e+00> : vector<8x100xf32>
    %3 = tpu.matmul %1, %2, %cst {dimension_numbers = #tpu.dot_dimension_numbers<[1], [0], [0], [1], [0, 0, 1, 1], [], []>} : vector<8x784xbf16>, vector<784x100xbf16>, vector<8x100xf32> -> vector<8x100xf32>
    %c0_3 = arith.constant 0 : index
    %c0_4 = arith.constant 0 : index
    %4 = vector.load %arg3[%c0_3, %c0_4] : memref<1x100xf32, #tpu.memory_space<vmem>>, vector<1x100xf32>
    %5 = vector.broadcast %4 : vector<1x100xf32> to vector<8x100xf32>
    %6 = arith.addf %3, %5 : vector<8x100xf32>
    %cst_5 = arith.constant 0.000000e+00 : f32
    %7 = vector.broadcast %cst_5 : f32 to vector<8x100xf32>
    %8 = arith.maximumf %6, %7 : vector<8x100xf32>
    %9 = arith.truncf %8 : vector<8x100xf32> to vector<8x100xbf16>
    %c0_6 = arith.constant 0 : index
    %c0_7 = arith.constant 0 : index
    %10 = vector.load %arg4[%c0_6, %c0_7] : memref<100x10xbf16, #tpu.memory_space<vmem>>, vector<100x10xbf16>
    %cst_8 = arith.constant dense<0.000000e+00> : vector<8x10xf32>
    %11 = tpu.matmul %9, %10, %cst_8 {dimension_numbers = #tpu.dot_dimension_numbers<[1], [0], [0], [1], [0, 0, 1, 1], [], []>} : vector<8x100xbf16>, vector<100x10xbf16>, vector<8x10xf32> -> vector<8x10xf32>
    %c0_9 = arith.constant 0 : index
    %c0_10 = arith.constant 0 : index
    %12 = vector.load %arg5[%c0_9, %c0_10] : memref<1x10xf32, #tpu.memory_space<vmem>>, vector<1x10xf32>
    %13 = vector.broadcast %12 : vector<1x10xf32> to vector<8x10xf32>
    %14 = arith.addf %11, %13 : vector<8x10xf32>
    %c0_11 = arith.constant 0 : index
    %c0_12 = arith.constant 0 : index
    %15 = vector.load %arg6[%c0_11, %c0_12] : memref<8x10xf32, #tpu.memory_space<vmem>>, vector<8x10xf32>
    tpu.vector_store %arg6[%c0_11, %c0_12], %14 {strides = array<i32>} : memref<8x10xf32, #tpu.memory_space<vmem>>, vector<8x10xf32>,
    return
  }
  func.func @transform_0(%arg0: i32) -> (i32, i32) {
    %c0_i32 = arith.constant 0 : i32
    %c0_i32_0 = arith.constant 0 : i32
    return %arg0, %c0_i32 : i32, i32
  }
  func.func @transform_1(%arg0: i32) -> (i32, i32) {
    %c0_i32 = arith.constant 0 : i32
    %c0_i32_0 = arith.constant 0 : i32
    %c0_i32_1 = arith.constant 0 : i32
    return %c0_i32, %c0_i32_0 : i32, i32
  }
  func.func @transform_2(%arg0: i32) -> (i32, i32) {
    %c0_i32 = arith.constant 0 : i32
    %c0_i32_0 = arith.constant 0 : i32
    %c0_i32_1 = arith.constant 0 : i32
    return %c0_i32, %c0_i32_0 : i32, i32
  }
  func.func @transform_3(%arg0: i32) -> (i32, i32) {
    %c0_i32 = arith.constant 0 : i32
    %c0_i32_0 = arith.constant 0 : i32
    %c0_i32_1 = arith.constant 0 : i32
    return %c0_i32, %c0_i32_0 : i32, i32
  }
  func.func @transform_4(%arg0: i32) -> (i32, i32) {
    %c0_i32 = arith.constant 0 : i32
    %c0_i32_0 = arith.constant 0 : i32
    %c0_i32_1 = arith.constant 0 : i32
    return %c0_i32, %c0_i32_0 : i32, i32
  }
  func.func @transform_5(%arg0: i32) -> (i32, i32) {
    %c0_i32 = arith.constant 0 : i32
    %c0_i32_0 = arith.constant 0 : i32
    return %arg0, %c0_i32 : i32, i32
  }
}

</mosaic_0001>

<llo_original>
// kernel: neural_net_forward.1
$region0: #{neural_net_forward.1}
  #allocation0 [shape = 'u32[]', space=smem, size = 0x4, offset = 0x4, fixed_abs, tag = 'smem constant byte address 0x4 - core index']
  #allocation1 [shape = 'u32[72,128]{1,0:T(1,128)}', space=vmem, size = 0x9000, scoped, tag = 'internal scratch']
  %s0 = inlined_call_operand.vmem [shape: f32[8,784], index: 0, kind: input, shape index: {}]
  %s1 = inlined_call_operand.vmem [shape: bf16[784,100], index: 1, kind: input, shape index: {}]
  %s2 = inlined_call_operand.vmem [shape: f32[1,100], index: 2, kind: input, shape index: {}]
  %s3 = inlined_call_operand.vmem [shape: bf16[100,10], index: 3, kind: input, shape index: {}]
  %s4 = inlined_call_operand.vmem [shape: f32[1,10], index: 4, kind: input, shape index: {}]
  %s5 = inlined_call_operand.hbm [shape: f32[8,10], index: 5, kind: output, shape index: {}]
  %s6 = sld [smem:[#allocation0]]
  $region30: #{neural_net_forward.1} parent=0
    _
  %s8 = ssub.s32 1, %s6
  %s9 = scalar_select 0, %s8, %s6
  $region1: #{neural_net_forward.1} parent=0
    #allocation2 [shape = 'u8[4096]{0}', space=vmem, size = 0x1000, scoped, tag = 'output window, operand 0, single buffered']
    #allocation3 [shape = 's32[1]{0}', space=sflag, size = 0x4, scoped, tag = 'scoped memory for neural_net_forward.1']
    %10 = vsyncpa [#allocation3], 0
    // Predicated region
    $region2: #{neural_net_forward.1} parent=1 // pred_check
      _
    $region3: #{neural_net_forward.1} parent=1 // pred_check_branch
      %12 = sbr.rel (0) target = $region5
    $region4: #{neural_net_forward.1} parent=1 // pred_region
      _
    $region5: #{neural_net_forward.1} parent=1 // pred_fallthru
      _
    // Predicated region
    $region6: #{neural_net_forward.1} parent=1 // pred_check
      _
    $region7: #{neural_net_forward.1} parent=1 // pred_check_branch
      %14 = sbr.rel (0) target = $region9
    $region8: #{neural_net_forward.1} parent=1 // pred_region
      _
    $region9: #{neural_net_forward.1} parent=1 // pred_fallthru
      _
    // Predicated region
    $region10: #{neural_net_forward.1} parent=1 // pred_check
      _
    $region11: #{neural_net_forward.1} parent=1 // pred_check_branch
      %16 = sbr.rel (0) target = $region13
    $region12: #{neural_net_forward.1} parent=1 // pred_region
      _
    $region13: #{neural_net_forward.1} parent=1 // pred_fallthru
      _
    // Predicated region
    $region14: #{neural_net_forward.1} parent=1 // pred_check
      _
    $region15: #{neural_net_forward.1} parent=1 // pred_check_branch
      %18 = sbr.rel (0) target = $region17
    $region16: #{neural_net_forward.1} parent=1 // pred_region
      _
    $region17: #{neural_net_forward.1} parent=1 // pred_fallthru
      _
    // Predicated region
    $region18: #{neural_net_forward.1} parent=1 // pred_check
      _
    $region19: #{neural_net_forward.1} parent=1 // pred_check_branch
      %20 = sbr.rel (0) target = $region21
    $region20: #{neural_net_forward.1} parent=1 // pred_region
      _
    $region21: #{neural_net_forward.1} parent=1 // pred_fallthru
      _
    %v22 = vld [vmem:[%s0] sm:$0xff]
    %v23 = vld [vmem:[%s0 + $0x8] sm:$0xff]
    %v24 = vld [vmem:[%s0 + $0x10] sm:$0xff]
    %v25 = vld [vmem:[%s0 + $0x18] sm:$0xff]
    %v26 = vld [vmem:[%s0 + $0x20] sm:$0xff]
    %v27 = vld [vmem:[%s0 + $0x28] sm:$0xff]
    %v28 = vld [vmem:[%s0 + $0x30] sm:$0xff]
    %v29 = vpack.c.bf16 %v22, %v22
    %v30 = vpack.c.bf16 %v23, %v23
    %v31 = vpack.c.bf16 %v24, %v24
    %v32 = vpack.c.bf16 %v25, %v25
    %v33 = vpack.c.bf16 %v26, %v26
    %v34 = vpack.c.bf16 %v27, %v27
    %v35 = vpack.c.bf16 %v28, %v28
    %v36 = vld [vmem:[%s1] sm:$0xf]
    %v37 = vld [vmem:[%s1 + $0x4] sm:$0xf]
    %v38 = vld [vmem:[%s1 + $0x8] sm:$0xf]
    %v39 = vld [vmem:[%s1 + $0xc] sm:$0xf]
    %v40 = vld [vmem:[%s1 + $0x10] sm:$0xf]
    %v41 = vld [vmem:[%s1 + $0x14] sm:$0xf]
    %v42 = vld [vmem:[%s1 + $0x18] sm:$0xf]
    %v43 = vld [vmem:[%s1 + $0x1c] sm:$0xf]
    %v44 = vld [vmem:[%s1 + $0x20] sm:$0xf]
    %v45 = vld [vmem:[%s1 + $0x24] sm:$0xf]
    %v46 = vld [vmem:[%s1 + $0x28] sm:$0xf]
    %v47 = vld [vmem:[%s1 + $0x2c] sm:$0xf]
    %v48 = vld [vmem:[%s1 + $0x30] sm:$0xf]
    %v49 = vld [vmem:[%s1 + $0x34] sm:$0xf]
    %v50 = vld [vmem:[%s1 + $0x38] sm:$0xf]
    %v51 = vld [vmem:[%s1 + $0x3c] sm:$0xf]
    %v52 = vld [vmem:[%s1 + $0x40] sm:$0xf]
    %v53 = vld [vmem:[%s1 + $0x44] sm:$0xf]
    %v54 = vld [vmem:[%s1 + $0x48] sm:$0xf]
    %v55 = vld [vmem:[%s1 + $0x4c] sm:$0xf]
    %v56 = vld [vmem:[%s1 + $0x50] sm:$0xf]
    %v57 = vld [vmem:[%s1 + $0x54] sm:$0xf]
    %v58 = vld [vmem:[%s1 + $0x58] sm:$0xf]
    %v59 = vld [vmem:[%s1 + $0x5c] sm:$0xf]
    %v60 = vld [vmem:[%s1 + $0x60] sm:$0xf]
    %v61 = vld [vmem:[%s1 + $0x64] sm:$0xf]
    %v62 = vld [vmem:[%s1 + $0x68] sm:$0xf]
    %v63 = vld [vmem:[%s1 + $0x6c] sm:$0xf]
    %v64 = vld [vmem:[%s1 + $0x70] sm:$0xf]
    %v65 = vld [vmem:[%s1 + $0x74] sm:$0xf]
    %v66 = vld [vmem:[%s1 + $0x78] sm:$0xf]
    %v67 = vld [vmem:[%s1 + $0x7c] sm:$0xf]
    %v68 = vld [vmem:[%s1 + $0x80] sm:$0xf]
    %v69 = vld [vmem:[%s1 + $0x84] sm:$0xf]
    %v70 = vld [vmem:[%s1 + $0x88] sm:$0xf]
    %v71 = vld [vmem:[%s1 + $0x8c] sm:$0xf]
    %v72 = vld [vmem:[%s1 + $0x90] sm:$0xf]
    %v73 = vld [vmem:[%s1 + $0x94] sm:$0xf]
    %v74 = vld [vmem:[%s1 + $0x98] sm:$0xf]
    %v75 = vld [vmem:[%s1 + $0x9c] sm:$0xf]
    %v76 = vld [vmem:[%s1 + $0xa0] sm:$0xf]
    %v77 = vld [vmem:[%s1 + $0xa4] sm:$0xf]
    %v78 = vld [vmem:[%s1 + $0xa8] sm:$0xf]
    %v79 = vld [vmem:[%s1 + $0xac] sm:$0xf]
    %v80 = vld [vmem:[%s1 + $0xb0] sm:$0xf]
    %v81 = vld [vmem:[%s1 + $0xb4] sm:$0xf]
    %v82 = vld [vmem:[%s1 + $0xb8] sm:$0xf]
    %v83 = vld [vmem:[%s1 + $0xbc] sm:$0xf]
    %v84 = vld [vmem:[%s1 + $0xc0] sm:$0xf]
    %v85 = vld [vmem:[%s1 + $0xc4] sm:$0xf]
    %v86 = vld [vmem:[%s1 + $0xc8] sm:$0xf]
    %v87 = vld [vmem:[%s1 + $0xcc] sm:$0xf]
    %v88 = vld [vmem:[%s1 + $0xd0] sm:$0xf]
    %v89 = vld [vmem:[%s1 + $0xd4] sm:$0xf]
    %v90 = vld [vmem:[%s1 + $0xd8] sm:$0xf]
    %v91 = vld [vmem:[%s1 + $0xdc] sm:$0xf]
    %v92 = vld [vmem:[%s1 + $0xe0] sm:$0xf]
    %v93 = vld [vmem:[%s1 + $0xe4] sm:$0xf]
    %v94 = vld [vmem:[%s1 + $0xe8] sm:$0xf]
    %v95 = vld [vmem:[%s1 + $0xec] sm:$0xf]
    %v96 = vld [vmem:[%s1 + $0xf0] sm:$0xf]
    %v97 = vld [vmem:[%s1 + $0xf4] sm:$0xf]
    %v98 = vld [vmem:[%s1 + $0xf8] sm:$0xf]
    %v99 = vld [vmem:[%s1 + $0xfc] sm:$0xf]
    %v100 = vld [vmem:[%s1 + $0x100] sm:$0xf]
    %v101 = vld [vmem:[%s1 + $0x104] sm:$0xf]
    %v102 = vld [vmem:[%s1 + $0x108] sm:$0xf]
    %v103 = vld [vmem:[%s1 + $0x10c] sm:$0xf]
    %v104 = vld [vmem:[%s1 + $0x110] sm:$0xf]
    %v105 = vld [vmem:[%s1 + $0x114] sm:$0xf]
    %v106 = vld [vmem:[%s1 + $0x118] sm:$0xf]
    %v107 = vld [vmem:[%s1 + $0x11c] sm:$0xf]
    %v108 = vld [vmem:[%s1 + $0x120] sm:$0xf]
    %v109 = vld [vmem:[%s1 + $0x124] sm:$0xf]
    %v110 = vld [vmem:[%s1 + $0x128] sm:$0xf]
    %v111 = vld [vmem:[%s1 + $0x12c] sm:$0xf]
    %v112 = vld [vmem:[%s1 + $0x130] sm:$0xf]
    %v113 = vld [vmem:[%s1 + $0x134] sm:$0xf]
    %v114 = vld [vmem:[%s1 + $0x138] sm:$0xf]
    %v115 = vld [vmem:[%s1 + $0x13c] sm:$0xf]
    %v116 = vld [vmem:[%s1 + $0x140] sm:$0xf]
    %v117 = vld [vmem:[%s1 + $0x144] sm:$0xf]
    %v118 = vld [vmem:[%s1 + $0x148] sm:$0xf]
    %v119 = vld [vmem:[%s1 + $0x14c] sm:$0xf]
    %v120 = vld [vmem:[%s1 + $0x150] sm:$0xf]
    %v121 = vld [vmem:[%s1 + $0x154] sm:$0xf]
    %v122 = vld [vmem:[%s1 + $0x158] sm:$0xf]
    %v123 = vld [vmem:[%s1 + $0x15c] sm:$0xf]
    %v124 = vld [vmem:[%s1 + $0x160] sm:$0xf]
    %v125 = vld [vmem:[%s1 + $0x164] sm:$0xf]
    %v126 = vld [vmem:[%s1 + $0x168] sm:$0xf]
    %v127 = vld [vmem:[%s1 + $0x16c] sm:$0xf]
    %v128 = vld [vmem:[%s1 + $0x170] sm:$0xf]
    %v129 = vld [vmem:[%s1 + $0x174] sm:$0xf]
    %v130 = vld [vmem:[%s1 + $0x178] sm:$0xf]
    %v131 = vld [vmem:[%s1 + $0x17c] sm:$0xf]
    %v132 = vld [vmem:[%s1 + $0x180] sm:$0xf]
    %v133 = vld [vmem:[%s1 + $0x184] sm:$0xf]
    %v134 = vld [vmem:[%s2] sm:$0x1]
    %v136 = vperm.slane %v134, 0
    %v236 = vunpack.c.l.b16 %v36
    %v237 = vunpack.c.l.b16 %v37
    %v238 = vunpack.c.l.b16 %v38
    %v239 = vunpack.c.l.b16 %v39
    %v240 = vunpack.c.l.b16 %v40
    %v241 = vunpack.c.l.b16 %v41
    %v242 = vunpack.c.l.b16 %v42
    %v243 = vunpack.c.l.b16 %v43
    %v244 = vunpack.c.l.b16 %v44
    %v245 = vunpack.c.l.b16 %v45
    %v246 = vunpack.c.l.b16 %v46
    %v247 = vunpack.c.l.b16 %v47
    %v248 = vunpack.c.l.b16 %v48
    %v249 = vunpack.c.l.b16 %v49
    %v250 = vunpack.c.l.b16 %v50
    %v251 = vunpack.c.l.b16 %v51
    %v252 = vunpack.c.l.b16 %v52
    %v253 = vunpack.c.l.b16 %v53
    %v254 = vunpack.c.l.b16 %v54
    %v255 = vunpack.c.l.b16 %v55
    %v256 = vunpack.c.l.b16 %v56
    %v257 = vunpack.c.l.b16 %v57
    %v258 = vunpack.c.l.b16 %v58
    %v259 = vunpack.c.l.b16 %v59
    %v260 = vunpack.c.l.b16 %v60
    %v261 = vunpack.c.l.b16 %v61
    %v262 = vunpack.c.l.b16 %v62
    %v263 = vunpack.c.l.b16 %v63
    %v264 = vunpack.c.l.b16 %v64
    %v265 = vunpack.c.l.b16 %v65
    %v266 = vunpack.c.l.b16 %v66
    %v267 = vunpack.c.l.b16 %v67
    %v268 = vunpack.c.l.b16 %v68
    %v269 = vunpack.c.l.b16 %v69
    %v270 = vunpack.c.l.b16 %v70
    %v271 = vunpack.c.l.b16 %v71
    %v272 = vunpack.c.l.b16 %v72
    %v273 = vunpack.c.l.b16 %v73
    %v274 = vunpack.c.l.b16 %v74
    %v275 = vunpack.c.l.b16 %v75
    %v276 = vunpack.c.l.b16 %v76
    %v277 = vunpack.c.l.b16 %v77
    %v278 = vunpack.c.l.b16 %v78
    %v279 = vunpack.c.l.b16 %v79
    %v280 = vunpack.c.l.b16 %v80
    %v281 = vunpack.c.l.b16 %v81
    %v282 = vunpack.c.l.b16 %v82
    %v283 = vunpack.c.l.b16 %v83
    %v284 = vunpack.c.l.b16 %v84
    %v285 = vunpack.c.l.b16 %v85
    %v286 = vunpack.c.l.b16 %v86
    %v287 = vunpack.c.l.b16 %v87
    %v288 = vunpack.c.l.b16 %v88
    %v289 = vunpack.c.l.b16 %v89
    %v290 = vunpack.c.l.b16 %v90
    %v291 = vunpack.c.l.b16 %v91
    %v292 = vunpack.c.l.b16 %v92
    %v293 = vunpack.c.l.b16 %v93
    %v294 = vunpack.c.l.b16 %v94
    %v295 = vunpack.c.l.b16 %v95
    %v296 = vunpack.c.l.b16 %v96
    %v297 = vunpack.c.l.b16 %v97
    %v298 = vunpack.c.l.b16 %v98
    %v299 = vunpack.c.l.b16 %v99
    %v300 = vunpack.c.l.b16 %v100
    %v301 = vunpack.c.l.b16 %v101
    %v302 = vunpack.c.l.b16 %v102
    %v303 = vunpack.c.l.b16 %v103
    %v304 = vunpack.c.l.b16 %v104
    %v305 = vunpack.c.l.b16 %v105
    %v306 = vunpack.c.l.b16 %v106
    %v307 = vunpack.c.l.b16 %v107
    %v308 = vunpack.c.l.b16 %v108
    %v309 = vunpack.c.l.b16 %v109
    %v310 = vunpack.c.l.b16 %v110
    %v311 = vunpack.c.l.b16 %v111
    %v312 = vunpack.c.l.b16 %v112
    %v313 = vunpack.c.l.b16 %v113
    %v314 = vunpack.c.l.b16 %v114
    %v315 = vunpack.c.l.b16 %v115
    %v316 = vunpack.c.l.b16 %v116
    %v317 = vunpack.c.l.b16 %v117
    %v318 = vunpack.c.l.b16 %v118
    %v319 = vunpack.c.l.b16 %v119
    %v320 = vunpack.c.l.b16 %v120
    %v321 = vunpack.c.l.b16 %v121
    %v322 = vunpack.c.l.b16 %v122
    %v323 = vunpack.c.l.b16 %v123
    %v324 = vunpack.c.l.b16 %v124
    %v325 = vunpack.c.l.b16 %v125
    %v326 = vunpack.c.l.b16 %v126
    %v327 = vunpack.c.l.b16 %v127
    %v328 = vunpack.c.l.b16 %v128
    %v329 = vunpack.c.l.b16 %v129
    %v330 = vunpack.c.l.b16 %v130
    %v331 = vunpack.c.l.b16 %v131
    %v332 = vunpack.c.l.b16 %v132
    %v333 = vunpack.c.l.b16 %v133
    %v334 = vpack.c.b16 %v237, %v236
    %v335 = vpack.c.b16 %v239, %v238
    %v336 = vpack.c.b16 %v241, %v240
    %v337 = vpack.c.b16 %v243, %v242
    %v338 = vpack.c.b16 %v245, %v244
    %v339 = vpack.c.b16 %v247, %v246
    %v340 = vpack.c.b16 %v249, %v248
    %v341 = vpack.c.b16 %v251, %v250
    %v342 = vpack.c.b16 %v253, %v252
    %v343 = vpack.c.b16 %v255, %v254
    %v344 = vpack.c.b16 %v257, %v256
    %v345 = vpack.c.b16 %v259, %v258
    %v346 = vpack.c.b16 %v261, %v260
    %v347 = vpack.c.b16 %v263, %v262
    %v348 = vpack.c.b16 %v265, %v264
    %v349 = vpack.c.b16 %v267, %v266
    %v350 = vpack.c.b16 %v269, %v268
    %v351 = vpack.c.b16 %v271, %v270
    %v352 = vpack.c.b16 %v273, %v272
    %v353 = vpack.c.b16 %v275, %v274
    %v354 = vpack.c.b16 %v277, %v276
    %v355 = vpack.c.b16 %v279, %v278
    %v356 = vpack.c.b16 %v281, %v280
    %v357 = vpack.c.b16 %v283, %v282
    %v358 = vpack.c.b16 %v285, %v284
    %v359 = vpack.c.b16 %v287, %v286
    %v360 = vpack.c.b16 %v289, %v288
    %v361 = vpack.c.b16 %v291, %v290
    %v362 = vpack.c.b16 %v293, %v292
    %v363 = vpack.c.b16 %v295, %v294
    %v364 = vpack.c.b16 %v297, %v296
    %v365 = vpack.c.b16 %v299, %v298
    %v366 = vpack.c.b16 %v301, %v300
    %v367 = vpack.c.b16 %v303, %v302
    %v368 = vpack.c.b16 %v305, %v304
    %v369 = vpack.c.b16 %v307, %v306
    %v370 = vpack.c.b16 %v309, %v308
    %v371 = vpack.c.b16 %v311, %v310
    %v372 = vpack.c.b16 %v313, %v312
    %v373 = vpack.c.b16 %v315, %v314
    %v374 = vpack.c.b16 %v317, %v316
    %v375 = vpack.c.b16 %v319, %v318
    %v376 = vpack.c.b16 %v321, %v320
    %v377 = vpack.c.b16 %v323, %v322
    %v378 = vpack.c.b16 %v325, %v324
    %v379 = vpack.c.b16 %v327, %v326
    %v380 = vpack.c.b16 %v329, %v328
    %v381 = vpack.c.b16 %v331, %v330
    %v382 = vpack.c.b16 %v333, %v332
    %vm432 = vcmask 130048
    %v434 = vsel %vm432, %v35, 0
    %436 = vmatpush.bf16.msra.mxu0 %v341
    %437 = vmatpush.bf16.msra.mxu0 %v340
    %438 = vmatpush.bf16.msra.mxu0 %v339
    %439 = vmatpush.bf16.msra.mxu0 %v338
    %440 = vmatpush.bf16.msra.mxu0 %v337
    %441 = vmatpush.bf16.msra.mxu0 %v336
    %442 = vmatpush.bf16.msra.mxu0 %v335
    %443 = vmatpush.bf16.msra.mxu0 %v334
    %444 = vmatmul.bf16.gmra.mxu0 %v29
    %v445 = vpop.f32.mrf.mxu0
    %v446 = vadd.f32 %v136, %v445
    %v447 = vpop.f32.mrf.mxu0
    %448 = vdwg.mxu0
    %449 = vmatpush.bf16.msra.mxu0 %v349
    %450 = vmatpush.bf16.msra.mxu0 %v348
    %451 = vmatpush.bf16.msra.mxu0 %v347
    %452 = vmatpush.bf16.msra.mxu0 %v346
    %453 = vmatpush.bf16.msra.mxu0 %v345
    %454 = vmatpush.bf16.msra.mxu0 %v344
    %455 = vmatpush.bf16.msra.mxu0 %v343
    %456 = vmatpush.bf16.msra.mxu0 %v342
    %457 = vmatmul.bf16.gmra.mxu0 %v30
    %v458 = vpop.f32.mrf.mxu0
    %v459 = vadd.f32 %v446, %v458
    %v460 = vpop.f32.mrf.mxu0
    %461 = vdwg.mxu0
    %462 = vmatpush.bf16.msra.mxu0 %v357
    %463 = vmatpush.bf16.msra.mxu0 %v356
    %464 = vmatpush.bf16.msra.mxu0 %v355
    %465 = vmatpush.bf16.msra.mxu0 %v354
    %466 = vmatpush.bf16.msra.mxu0 %v353
    %467 = vmatpush.bf16.msra.mxu0 %v352
    %468 = vmatpush.bf16.msra.mxu0 %v351
    %469 = vmatpush.bf16.msra.mxu0 %v350
    %470 = vmatmul.bf16.gmra.mxu0 %v31
    %v471 = vpop.f32.mrf.mxu0
    %v472 = vadd.f32 %v459, %v471
    %v473 = vpop.f32.mrf.mxu0
    %474 = vdwg.mxu0
    %475 = vmatpush.bf16.msra.mxu0 %v365
    %476 = vmatpush.bf16.msra.mxu0 %v364
    %477 = vmatpush.bf16.msra.mxu0 %v363
    %478 = vmatpush.bf16.msra.mxu0 %v362
    %479 = vmatpush.bf16.msra.mxu0 %v361
    %480 = vmatpush.bf16.msra.mxu0 %v360
    %481 = vmatpush.bf16.msra.mxu0 %v359
    %482 = vmatpush.bf16.msra.mxu0 %v358
    %483 = vmatmul.bf16.gmra.mxu0 %v32
    %v484 = vpop.f32.mrf.mxu0
    %v485 = vadd.f32 %v472, %v484
    %v486 = vpop.f32.mrf.mxu0
    %487 = vdwg.mxu0
    %488 = vmatpush.bf16.msra.mxu0 %v373
    %489 = vmatpush.bf16.msra.mxu0 %v372
    %490 = vmatpush.bf16.msra.mxu0 %v371
    %491 = vmatpush.bf16.msra.mxu0 %v370
    %492 = vmatpush.bf16.msra.mxu0 %v369
    %493 = vmatpush.bf16.msra.mxu0 %v368
    %494 = vmatpush.bf16.msra.mxu0 %v367
    %495 = vmatpush.bf16.msra.mxu0 %v366
    %496 = vmatmul.bf16.gmra.mxu0 %v33
    %v497 = vpop.f32.mrf.mxu0
    %v498 = vadd.f32 %v485, %v497
    %v499 = vpop.f32.mrf.mxu0
    %500 = vdwg.mxu0
    %501 = vmatpush.bf16.msra.mxu0 %v381
    %502 = vmatpush.bf16.msra.mxu0 %v380
    %503 = vmatpush.bf16.msra.mxu0 %v379
    %504 = vmatpush.bf16.msra.mxu0 %v378
    %505 = vmatpush.bf16.msra.mxu0 %v377
    %506 = vmatpush.bf16.msra.mxu0 %v376
    %507 = vmatpush.bf16.msra.mxu0 %v375
    %508 = vmatpush.bf16.msra.mxu0 %v374
    %509 = vmatmul.bf16.gmra.mxu0 %v34
    %v510 = vpop.f32.mrf.mxu0
    %v511 = vadd.f32 %v498, %v510
    %v512 = vpop.f32.mrf.mxu0
    %513 = vdwg.mxu0
    %514 = vmatpush.bf16.msra.mxu0 0
    %515 = vmatpush.bf16.msra.mxu0 0
    %516 = vmatpush.bf16.msra.mxu0 0
    %517 = vmatpush.bf16.msra.mxu0 0
    %518 = vmatpush.bf16.msra.mxu0 0
    %519 = vmatpush.bf16.msra.mxu0 0
    %520 = vmatpush.bf16.msra.mxu0 0
    %521 = vmatpush.bf16.msra.mxu0 %v382
    %522 = vmatmul.bf16.gmra.mxu0 %v434
    %v523 = vpop.f32.mrf.mxu0
    %v524 = vadd.f32 %v511, %v523
    %v525 = vpop.f32.mrf.mxu0
    %526 = vdwg.mxu0
    %v527 = vmax.f32 %v524, 0.0
    %v528 = vpack.c.bf16 %v527, %v527
    %v529 = vld [vmem:[%s3] sm:$0xf]
    %v530 = vld [vmem:[%s3 + $0x4] sm:$0xf]
    %v531 = vld [vmem:[%s3 + $0x8] sm:$0xf]
    %v532 = vld [vmem:[%s3 + $0xc] sm:$0xf]
    %v533 = vld [vmem:[%s3 + $0x10] sm:$0xf]
    %v534 = vld [vmem:[%s3 + $0x14] sm:$0xf]
    %v535 = vld [vmem:[%s3 + $0x18] sm:$0xf]
    %v536 = vld [vmem:[%s3 + $0x1c] sm:$0xf]
    %v537 = vld [vmem:[%s3 + $0x20] sm:$0xf]
    %v538 = vld [vmem:[%s3 + $0x24] sm:$0xf]
    %v539 = vld [vmem:[%s3 + $0x28] sm:$0xf]
    %v540 = vld [vmem:[%s3 + $0x2c] sm:$0xf]
    %v541 = vld [vmem:[%s3 + $0x30] sm:$0x3]
    %v542 = vld [vmem:[%s4] sm:$0x1]
    %v544 = vperm.slane %v542, 0
    %v559 = vunpack.c.l.b16 %v529
    %v560 = vunpack.c.l.b16 %v530
    %v561 = vunpack.c.l.b16 %v531
    %v562 = vunpack.c.l.b16 %v532
    %v563 = vunpack.c.l.b16 %v533
    %v564 = vunpack.c.l.b16 %v534
    %v565 = vunpack.c.l.b16 %v535
    %v566 = vunpack.c.l.b16 %v536
    %v567 = vunpack.c.l.b16 %v537
    %v568 = vunpack.c.l.b16 %v538
    %v569 = vunpack.c.l.b16 %v539
    %v570 = vunpack.c.l.b16 %v540
    %v571 = vunpack.c.l.b16 %v541
    %v572 = vpack.c.b16 %v560, %v559
    %v573 = vpack.c.b16 %v562, %v561
    %v574 = vpack.c.b16 %v564, %v563
    %v575 = vpack.c.b16 %v566, %v565
    %v576 = vpack.c.b16 %v568, %v567
    %v577 = vpack.c.b16 %v570, %v569
    %v578 = vpack.c.b16 %v571, %v571
    %vm585 = vcmask 818176
    %v587 = vsel %vm585, %v528, 0
    %vm589 = vcmask 1041408
    %v591 = vsel %vm589, %v578, 0
    %593 = vmatpush.bf16.msra.mxu0 0
    %594 = vmatpush.bf16.msra.mxu0 %v591
    %595 = vmatpush.bf16.msra.mxu0 %v577
    %596 = vmatpush.bf16.msra.mxu0 %v576
    %597 = vmatpush.bf16.msra.mxu0 %v575
    %598 = vmatpush.bf16.msra.mxu0 %v574
    %599 = vmatpush.bf16.msra.mxu0 %v573
    %600 = vmatpush.bf16.msra.mxu0 %v572
    %601 = vmatmul.bf16.gmra.mxu0 %v587
    %v602 = vpop.f32.mrf.mxu0
    %v603 = vadd.f32 %v544, %v602
    %v604 = vpop.f32.mrf.mxu0
    %605 = vdwg.mxu0
    %vm606 = vcmask 80896
    %607 = vst.msk [vmem:[#allocation2] sm:$0xff] %vm606, %v603
    // Predicated region
    $region22: #{neural_net_forward.1} parent=1 // pred_check
      _
    $region23: #{neural_net_forward.1} parent=1 // pred_check_branch
      %609 = sbr.rel (0) target = $region25
    $region24: #{neural_net_forward.1} parent=1 // pred_region
      %611 = vsyncadd [#allocation3], 0
      %s613 = sshll.u32 [#allocation2], 4
      %s614 = int_to_ptr.vmem [resolvable:$true] %s613
      %s615 = sshll.u32 %s5, 4
      %s616 = int_to_ptr.hbm [resolvable:$true] %s615
      %618 = dma.vmem_to_hbm [thread:$0]  %s614, 128, %s616, [#allocation3]
    $region25: #{neural_net_forward.1} parent=1 // pred_fallthru
      _
    // Predicated region
    $region26: #{neural_net_forward.1} parent=1 // pred_check
      _
    $region27: #{neural_net_forward.1} parent=1 // pred_check_branch
      %620 = sbr.rel (0) target = $region29
    $region28: #{neural_net_forward.1} parent=1 // pred_region
      %622 = dma.done [#allocation3], 128
    $region29: #{neural_net_forward.1} parent=1 // pred_fallthru
      _
    %623 = vsyncpa [#allocation3], 1

</llo_original>
